<compile_context>
chip_gen: v6e
topology: v6e:2x2x1
jax: 0.10.0
libtpu: 0.0.40
codegen_flags: <defaults>
</compile_context>

<pallas_src>
import jax
import jax.numpy as jnp
from jax.experimental import pallas as pl
from jax.experimental.pallas import tpu as pltpu


def make_interp_matrix(out_size: int, in_size: int) -> jnp.ndarray:
    """Row-interpolation matrix for bilinear resize with align_corners=True."""
    if in_size == 1:
        return jnp.ones((out_size, 1), jnp.float32)
    if out_size == 1:
        src = jnp.zeros((1,), jnp.float32)
    else:
        src = jnp.arange(out_size, dtype=jnp.float32) * (
            (in_size - 1) / (out_size - 1)
        )
    i0 = jnp.clip(jnp.floor(src).astype(jnp.int32), 0, in_size - 1)
    i1 = jnp.minimum(i0 + 1, in_size - 1)
    w1 = src - i0.astype(jnp.float32)
    w0 = 1.0 - w1
    oh0 = jax.nn.one_hot(i0, in_size, dtype=jnp.float32)
    oh1 = jax.nn.one_hot(i1, in_size, dtype=jnp.float32)
    return w0[:, None] * oh0 + w1[:, None] * oh1


def _make_silog_kernel(P, Hin, Win, Hout, Wout, do_row, do_col, col_first, has_mask):
    """Build a kernel specialised for (interp flags, matmul order, mask)."""
    # The batched column-interp matmul collapses (P, Hin, Win) -> (P*Hin, Win),
    # which is layout-preserving only when Hin is a multiple of 8 sublanes.
    big_col = do_col and col_first and (Hin % 8 == 0)

    def kernel(x_ref, wh_ref, wwT_ref, t_ref, *rest):
        if has_mask:
            m_ref, out_ref, s_acc, s2_acc, n_acc = rest
        else:
            out_ref, s_acc, s2_acc = rest
            m_ref = None
            n_acc = None

        step = pl.program_id(0)

        @pl.when(step == 0)
        def _init():
            s_acc[...] = jnp.zeros_like(s_acc)
            s2_acc[...] = jnp.zeros_like(s2_acc)
            if has_mask:
                n_acc[...] = jnp.zeros_like(n_acc)

        if big_col:
            # One dense MXU pass for the column interp of all P planes.
            x2 = jnp.dot(
                x_ref[...].reshape(P * Hin, Win),
                wwT_ref[...],
                preferred_element_type=jnp.float32,
            )  # (P*Hin, Wout)

        for i in range(P):  # static unroll over the plane batch
            if big_col:
                plane = x2[i * Hin:(i + 1) * Hin, :]          # (Hin, Wout)
            else:
                plane = x_ref[i]                               # (Hin, Win)
                if do_col and col_first:
                    plane = jnp.dot(plane, wwT_ref[...],
                                    preferred_element_type=jnp.float32)
            if do_row:
                plane = jnp.dot(wh_ref[...], plane,
                                preferred_element_type=jnp.float32)
            if do_col and not col_first:
                plane = jnp.dot(plane, wwT_ref[...],
                                preferred_element_type=jnp.float32)

            g = jnp.log(plane) - jnp.log(t_ref[i])             # (Hout, Wout)
            if has_mask:
                valid = m_ref[i] != 0
                # log(0)=-inf outside the mask is discarded here (no inf*0 NaN).
                g = jnp.where(valid, g, 0.0)
                n_acc[...] += valid.astype(jnp.float32)
            s_acc[...] += g
            s2_acc[...] += g * g

        @pl.when(step == pl.num_programs(0) - 1)
        def _finalize():
            # Single cross-lane reduction per output, only on the last step.
            out_ref[0] = jnp.sum(s_acc[...])
            out_ref[1] = jnp.sum(s2_acc[...])
            if has_mask:
                out_ref[2] = jnp.sum(n_acc[...])

    return kernel


def silog_loss(inp, target, mask=None, interpolate=True, max_planes_per_step=32):
    """JAX/Pallas equivalent of SILogLoss.forward.

    mask may be a bool array of `target`'s shape, or None.
    """
    inp = inp.astype(jnp.float32)
    target = target.astype(jnp.float32)
    B, C, Hin, Win = inp.shape
    Bt, Ct, Hout, Wout = target.shape
    assert (B, C) == (Bt, Ct)
    if not interpolate:
        assert (Hin, Win) == (Hout, Wout)

    do_row = bool(interpolate) and (Hout != Hin)
    do_col = bool(interpolate) and (Wout != Win)
    if do_row and do_col:
        # Pick the interpolation order with fewer MACs.
        macs_col_first = Hin * Wout * (Win + Hout)
        macs_row_first = Hout * Win * (Hin + Wout)
        col_first = macs_col_first <= macs_row_first
    else:
        col_first = True

    wh = make_interp_matrix(Hout, Hin) if do_row else jnp.zeros((1, 1), jnp.float32)
    wwT = make_interp_matrix(Wout, Win).T if do_col else jnp.zeros((1, 1), jnp.float32)

    n_planes = B * C
    has_mask = mask is not None

    x = inp.reshape(n_planes, Hin, Win)
    t = target.reshape(n_planes, Hout, Wout)
    m = mask.reshape(n_planes, Hout, Wout).astype(jnp.int8) if has_mask else None

    # Planes per grid step: budget double-buffered streamed blocks to ~20 MiB.
    bytes_per_plane = 4 * Hin * Win + 4 * Hout * Wout + (Hout * Wout if has_mask else 0)
    stream_budget = 20 * 1024 * 1024
    p_max = max(1, stream_budget // (2 * bytes_per_plane))
    P = int(max(1, min(n_planes, p_max, max_planes_per_step)))

    n_blocks = (n_planes + P - 1) // P
    pad = n_blocks * P - n_planes
    if pad:
        # Padded planes contribute g = log(1) - log(1) = 0 (mask = 0 if masked).
        x = jnp.concatenate([x, jnp.ones((pad, Hin, Win), jnp.float32)], axis=0)
        t = jnp.concatenate([t, jnp.ones((pad, Hout, Wout), jnp.float32)], axis=0)
        if has_mask:
            m = jnp.concatenate([m, jnp.zeros((pad, Hout, Wout), jnp.int8)], axis=0)

    kernel = _make_silog_kernel(P, Hin, Win, Hout, Wout,
                                do_row, do_col, col_first, has_mask)

    in_specs = [
        pl.BlockSpec((P, Hin, Win), lambda i: (i, 0, 0)),
        pl.BlockSpec(wh.shape, lambda i: (0, 0)),
        pl.BlockSpec(wwT.shape, lambda i: (0, 0)),
        pl.BlockSpec((P, Hout, Wout), lambda i: (i, 0, 0)),
    ]
    args = [x, wh, wwT, t]
    if has_mask:
        in_specs.append(pl.BlockSpec((P, Hout, Wout), lambda i: (i, 0, 0)))
        args.append(m)

    scratch = [pltpu.VMEM((Hout, Wout), jnp.float32),
               pltpu.VMEM((Hout, Wout), jnp.float32)]
    if has_mask:
        scratch.append(pltpu.VMEM((Hout, Wout), jnp.float32))

    n_out = 3 if has_mask else 2
    # TODO(synk): for v7x megacore, emit per-block partial sums to a VMEM output
    # and mark the plane axis "parallel"; kept single-accumulator here.
    sums = pl.pallas_call(
        kernel,
        out_shape=jax.ShapeDtypeStruct((n_out,), jnp.float32),
        grid_spec=pltpu.PrefetchScalarGridSpec(
            num_scalar_prefetch=0,
            grid=(n_blocks,),
            in_specs=in_specs,
            out_specs=pl.BlockSpec(memory_space=pltpu.SMEM),
            scratch_shapes=scratch,
        ),
        compiler_params=pltpu.CompilerParams(
            dimension_semantics=("arbitrary",),      # carried accumulators
            vmem_limit_bytes=40 * 1024 * 1024,
        ),
    )(*args)

    s, s2 = sums[0], sums[1]
    if has_mask:
        n = sums[2]
    else:
        n = jnp.float32(n_planes * Hout * Wout)      # compile-time constant

    mean = s / n
    # torch.var default is the unbiased estimator (correction=1); a mask with
    # fewer than 2 valid elements yields NaN, matching torch semantics.
    var = (s2 - n * mean * mean) / (n - 1.0)
    Dg = var + 0.15 * mean * mean
    return 10.0 * jnp.sqrt(Dg)


def _silog_loss_ref(inp, target, mask=None, interpolate=True):
    """Pure-JAX reference using the same interpolation matrices."""
    inp = inp.astype(jnp.float32)
    target = target.astype(jnp.float32)
    Hin, Win = inp.shape[-2:]
    Hout, Wout = target.shape[-2:]
    if interpolate and (Hin, Win) != (Hout, Wout):
        wh = make_interp_matrix(Hout, Hin)
        ww = make_interp_matrix(Wout, Win)
        interp = jnp.einsum("oh,bchw,pw->bcop", wh, inp, ww)
    else:
        interp = inp
    g = jnp.log(interp) - jnp.log(target)
    if mask is not None:
        g = g[mask]
    g = g.reshape(-1)
    n = g.shape[0]
    mean = jnp.mean(g)
    var = jnp.sum((g - mean) ** 2) / (n - 1)
    Dg = var + 0.15 * mean * mean
    return 10.0 * jnp.sqrt(Dg)


if __name__ == "__main__":
    key = jax.random.PRNGKey(0)
    k1, k2, k3, k4 = jax.random.split(key, 4)

    B, C = 2, 5
    Hin, Win = 8, 64
    Hout, Wout = 16, 128

    # Positive values (log is taken of both prediction and target).
    pred = jax.random.uniform(k1, (B, C, Hin, Win), jnp.float32, 0.1, 10.0)
    tgt = jax.random.uniform(k2, (B, C, Hout, Wout), jnp.float32, 0.1, 10.0)

    # 1) mask=None + bilinear upsample; small P forces multi-step grid + padding.
    loss = jax.block_until_ready(
        silog_loss(pred, tgt, mask=None, interpolate=True, max_planes_per_step=4))
    ref = _silog_loss_ref(pred, tgt, mask=None, interpolate=True)
    assert jnp.allclose(loss, ref, rtol=1e-4, atol=1e-4), (loss, ref)

    # 2) masked path; masked-out target pixels are 0 to exercise the log(0) guard.
    mask = jax.random.uniform(k3, (B, C, Hout, Wout)) < 0.7
    tgt_holes = jnp.where(mask, tgt, 0.0)
    loss_m = jax.block_until_ready(
        silog_loss(pred, tgt_holes, mask=mask, interpolate=True, max_planes_per_step=4))
    ref_m = _silog_loss_ref(pred, tgt_holes, mask=mask, interpolate=True)
    assert jnp.allclose(loss_m, ref_m, rtol=1e-4, atol=1e-4), (loss_m, ref_m)

    # 3) interpolate=False path (no matmuls at all).
    pred_same = jax.random.uniform(k4, (B, C, Hout, Wout), jnp.float32, 0.1, 10.0)
    loss_ni = jax.block_until_ready(
        silog_loss(pred_same, tgt, mask=None, interpolate=False))
    ref_ni = _silog_loss_ref(pred_same, tgt, mask=None, interpolate=False)
    assert jnp.allclose(loss_ni, ref_ni, rtol=1e-4, atol=1e-4), (loss_ni, ref_ni)

    print("KERNEL_OK")
</pallas_src>

<mosaic_0001>
module attributes {stable_mosaic.version = 11 : i64} {
  func.func @kernel(%arg0: i32, %arg1: memref<4x8x64xf32, #tpu.memory_space<vmem>>, %arg2: memref<16x8xf32, #tpu.memory_space<vmem>>, %arg3: memref<64x128xf32, #tpu.memory_space<vmem>>, %arg4: memref<4x16x128xf32, #tpu.memory_space<vmem>>, %arg5: memref<2xf32, #tpu.memory_space<smem>>, %arg6: memref<16x128xf32, #tpu.memory_space<vmem>>, %arg7: memref<16x128xf32, #tpu.memory_space<vmem>>) attributes {dimension_semantics = [#tpu.dimension_semantics<arbitrary>], iteration_bounds = array<i64: 3>, scalar_prefetch = 0 : i64, scratch_operands = 2 : i64, tpu.core_type = #tpu.core_type<tc>, window_params = [{transform_indices = @transform_0, window_bounds = array<i64: 4, 8, 64>}, {pipeline_mode = #tpu.pipeline_mode<synchronous>, transform_indices = @transform_1, window_bounds = array<i64: 16, 8>}, {pipeline_mode = #tpu.pipeline_mode<synchronous>, transform_indices = @transform_2, window_bounds = array<i64: 64, 128>}, {transform_indices = @transform_3, window_bounds = array<i64: 4, 16, 128>}, {transform_indices = @transform_4, window_bounds = array<i64: 2>}]} {
    %c0_i32 = arith.constant 0 : i32
    %0 = arith.cmpi eq, %arg0, %c0_i32 : i32
    %1 = arith.extui %0 : i1 to i32
    %c0_i32_0 = arith.constant 0 : i32
    %2 = arith.cmpi ne, %1, %c0_i32_0 : i32
    scf.if %2 {
      %cst_59 = arith.constant 0.000000e+00 : f32
      %70 = vector.broadcast %cst_59 : f32 to vector<16x128xf32>
      %c0_60 = arith.constant 0 : index
      %c0_61 = arith.constant 0 : index
      %71 = vector.load %arg6[%c0_60, %c0_61] : memref<16x128xf32, #tpu.memory_space<vmem>>, vector<16x128xf32>
      tpu.vector_store %arg6[%c0_60, %c0_61], %70 {strides = array<i32>} : memref<16x128xf32, #tpu.memory_space<vmem>>, vector<16x128xf32>,
      %cst_62 = arith.constant 0.000000e+00 : f32
      %72 = vector.broadcast %cst_62 : f32 to vector<16x128xf32>
      %c0_63 = arith.constant 0 : index
      %c0_64 = arith.constant 0 : index
      %73 = vector.load %arg7[%c0_63, %c0_64] : memref<16x128xf32, #tpu.memory_space<vmem>>, vector<16x128xf32>
      tpu.vector_store %arg7[%c0_63, %c0_64], %72 {strides = array<i32>} : memref<16x128xf32, #tpu.memory_space<vmem>>, vector<16x128xf32>,
    } else {
    }
    %c0 = arith.constant 0 : index
    %c0_1 = arith.constant 0 : index
    %c0_2 = arith.constant 0 : index
    %3 = vector.load %arg1[%c0, %c0_1, %c0_2] : memref<4x8x64xf32, #tpu.memory_space<vmem>>, vector<4x8x64xf32>
    %4 = vector.shape_cast %3 : vector<4x8x64xf32> to vector<32x64xf32>
    %c0_3 = arith.constant 0 : index
    %c0_4 = arith.constant 0 : index
    %5 = vector.load %arg3[%c0_3, %c0_4] : memref<64x128xf32, #tpu.memory_space<vmem>>, vector<64x128xf32>
    %cst = arith.constant dense<0.000000e+00> : vector<32x128xf32>
    %6 = tpu.matmul %4, %5, %cst {dimension_numbers = #tpu.dot_dimension_numbers<[1], [0], [0], [1], [0, 0, 1, 1], [], []>} : vector<32x64xf32>, vector<64x128xf32>, vector<32x128xf32> -> vector<32x128xf32>
    %7 = vector.extract_strided_slice %6 {offsets = [0, 0], sizes = [8, 128], strides = [1, 1]} : vector<32x128xf32> to vector<8x128xf32>
    %c0_5 = arith.constant 0 : index
    %c0_6 = arith.constant 0 : index
    %8 = vector.load %arg2[%c0_5, %c0_6] : memref<16x8xf32, #tpu.memory_space<vmem>>, vector<16x8xf32>
    %cst_7 = arith.constant dense<0.000000e+00> : vector<16x128xf32>
    %9 = tpu.matmul %8, %7, %cst_7 {dimension_numbers = #tpu.dot_dimension_numbers<[1], [0], [0], [1], [0, 0, 1, 1], [], []>} : vector<16x8xf32>, vector<8x128xf32>, vector<16x128xf32> -> vector<16x128xf32>
    %10 = math.log %9 : vector<16x128xf32>
    %c0_8 = arith.constant 0 : index
    %c0_9 = arith.constant 0 : index
    %c0_10 = arith.constant 0 : index
    %11 = vector.load %arg4[%c0_8, %c0_9, %c0_10] : memref<4x16x128xf32, #tpu.memory_space<vmem>>, vector<1x16x128xf32>
    %12 = vector.shape_cast %11 : vector<1x16x128xf32> to vector<16x128xf32>
    %13 = math.log %12 : vector<16x128xf32>
    %14 = arith.subf %10, %13 : vector<16x128xf32>
    %c0_11 = arith.constant 0 : index
    %c0_12 = arith.constant 0 : index
    %15 = vector.load %arg6[%c0_11, %c0_12] : memref<16x128xf32, #tpu.memory_space<vmem>>, vector<16x128xf32>
    %16 = arith.addf %15, %14 : vector<16x128xf32>
    %c0_13 = arith.constant 0 : index
    %c0_14 = arith.constant 0 : index
    %17 = vector.load %arg6[%c0_13, %c0_14] : memref<16x128xf32, #tpu.memory_space<vmem>>, vector<16x128xf32>
    tpu.vector_store %arg6[%c0_13, %c0_14], %16 {strides = array<i32>} : memref<16x128xf32, #tpu.memory_space<vmem>>, vector<16x128xf32>,
    %c0_15 = arith.constant 0 : index
    %c0_16 = arith.constant 0 : index
    %18 = vector.load %arg7[%c0_15, %c0_16] : memref<16x128xf32, #tpu.memory_space<vmem>>, vector<16x128xf32>
    %19 = arith.mulf %14, %14 : vector<16x128xf32>
    %20 = arith.addf %18, %19 : vector<16x128xf32>
    %c0_17 = arith.constant 0 : index
    %c0_18 = arith.constant 0 : index
    %21 = vector.load %arg7[%c0_17, %c0_18] : memref<16x128xf32, #tpu.memory_space<vmem>>, vector<16x128xf32>
    tpu.vector_store %arg7[%c0_17, %c0_18], %20 {strides = array<i32>} : memref<16x128xf32, #tpu.memory_space<vmem>>, vector<16x128xf32>,
    %22 = vector.extract_strided_slice %6 {offsets = [8, 0], sizes = [8, 128], strides = [1, 1]} : vector<32x128xf32> to vector<8x128xf32>
    %c0_19 = arith.constant 0 : index
    %c0_20 = arith.constant 0 : index
    %23 = vector.load %arg2[%c0_19, %c0_20] : memref<16x8xf32, #tpu.memory_space<vmem>>, vector<16x8xf32>
    %cst_21 = arith.constant dense<0.000000e+00> : vector<16x128xf32>
    %24 = tpu.matmul %23, %22, %cst_21 {dimension_numbers = #tpu.dot_dimension_numbers<[1], [0], [0], [1], [0, 0, 1, 1], [], []>} : vector<16x8xf32>, vector<8x128xf32>, vector<16x128xf32> -> vector<16x128xf32>
    %25 = math.log %24 : vector<16x128xf32>
    %c1 = arith.constant 1 : index
    %c0_22 = arith.constant 0 : index
    %c0_23 = arith.constant 0 : index
    %26 = vector.load %arg4[%c1, %c0_22, %c0_23] : memref<4x16x128xf32, #tpu.memory_space<vmem>>, vector<1x16x128xf32>
    %27 = vector.shape_cast %26 : vector<1x16x128xf32> to vector<16x128xf32>
    %28 = math.log %27 : vector<16x128xf32>
    %29 = arith.subf %25, %28 : vector<16x128xf32>
    %c0_24 = arith.constant 0 : index
    %c0_25 = arith.constant 0 : index
    %30 = vector.load %arg6[%c0_24, %c0_25] : memref<16x128xf32, #tpu.memory_space<vmem>>, vector<16x128xf32>
    %31 = arith.addf %30, %29 : vector<16x128xf32>
    %c0_26 = arith.constant 0 : index
    %c0_27 = arith.constant 0 : index
    %32 = vector.load %arg6[%c0_26, %c0_27] : memref<16x128xf32, #tpu.memory_space<vmem>>, vector<16x128xf32>
    tpu.vector_store %arg6[%c0_26, %c0_27], %31 {strides = array<i32>} : memref<16x128xf32, #tpu.memory_space<vmem>>, vector<16x128xf32>,
    %c0_28 = arith.constant 0 : index
    %c0_29 = arith.constant 0 : index
    %33 = vector.load %arg7[%c0_28, %c0_29] : memref<16x128xf32, #tpu.memory_space<vmem>>, vector<16x128xf32>
    %34 = arith.mulf %29, %29 : vector<16x128xf32>
    %35 = arith.addf %33, %34 : vector<16x128xf32>
    %c0_30 = arith.constant 0 : index
    %c0_31 = arith.constant 0 : index
    %36 = vector.load %arg7[%c0_30, %c0_31] : memref<16x128xf32, #tpu.memory_space<vmem>>, vector<16x128xf32>
    tpu.vector_store %arg7[%c0_30, %c0_31], %35 {strides = array<i32>} : memref<16x128xf32, #tpu.memory_space<vmem>>, vector<16x128xf32>,
    %37 = vector.extract_strided_slice %6 {offsets = [16, 0], sizes = [8, 128], strides = [1, 1]} : vector<32x128xf32> to vector<8x128xf32>
    %c0_32 = arith.constant 0 : index
    %c0_33 = arith.constant 0 : index
    %38 = vector.load %arg2[%c0_32, %c0_33] : memref<16x8xf32, #tpu.memory_space<vmem>>, vector<16x8xf32>
    %cst_34 = arith.constant dense<0.000000e+00> : vector<16x128xf32>
    %39 = tpu.matmul %38, %37, %cst_34 {dimension_numbers = #tpu.dot_dimension_numbers<[1], [0], [0], [1], [0, 0, 1, 1], [], []>} : vector<16x8xf32>, vector<8x128xf32>, vector<16x128xf32> -> vector<16x128xf32>
    %40 = math.log %39 : vector<16x128xf32>
    %c2 = arith.constant 2 : index
    %c0_35 = arith.constant 0 : index
    %c0_36 = arith.constant 0 : index
    %41 = vector.load %arg4[%c2, %c0_35, %c0_36] : memref<4x16x128xf32, #tpu.memory_space<vmem>>, vector<1x16x128xf32>
    %42 = vector.shape_cast %41 : vector<1x16x128xf32> to vector<16x128xf32>
    %43 = math.log %42 : vector<16x128xf32>
    %44 = arith.subf %40, %43 : vector<16x128xf32>
    %c0_37 = arith.constant 0 : index
    %c0_38 = arith.constant 0 : index
    %45 = vector.load %arg6[%c0_37, %c0_38] : memref<16x128xf32, #tpu.memory_space<vmem>>, vector<16x128xf32>
    %46 = arith.addf %45, %44 : vector<16x128xf32>
    %c0_39 = arith.constant 0 : index
    %c0_40 = arith.constant 0 : index
    %47 = vector.load %arg6[%c0_39, %c0_40] : memref<16x128xf32, #tpu.memory_space<vmem>>, vector<16x128xf32>
    tpu.vector_store %arg6[%c0_39, %c0_40], %46 {strides = array<i32>} : memref<16x128xf32, #tpu.memory_space<vmem>>, vector<16x128xf32>,
    %c0_41 = arith.constant 0 : index
    %c0_42 = arith.constant 0 : index
    %48 = vector.load %arg7[%c0_41, %c0_42] : memref<16x128xf32, #tpu.memory_space<vmem>>, vector<16x128xf32>
    %49 = arith.mulf %44, %44 : vector<16x128xf32>
    %50 = arith.addf %48, %49 : vector<16x128xf32>
    %c0_43 = arith.constant 0 : index
    %c0_44 = arith.constant 0 : index
    %51 = vector.load %arg7[%c0_43, %c0_44] : memref<16x128xf32, #tpu.memory_space<vmem>>, vector<16x128xf32>
    tpu.vector_store %arg7[%c0_43, %c0_44], %50 {strides = array<i32>} : memref<16x128xf32, #tpu.memory_space<vmem>>, vector<16x128xf32>,
    %52 = vector.extract_strided_slice %6 {offsets = [24, 0], sizes = [8, 128], strides = [1, 1]} : vector<32x128xf32> to vector<8x128xf32>
    %c0_45 = arith.constant 0 : index
    %c0_46 = arith.constant 0 : index
    %53 = vector.load %arg2[%c0_45, %c0_46] : memref<16x8xf32, #tpu.memory_space<vmem>>, vector<16x8xf32>
    %cst_47 = arith.constant dense<0.000000e+00> : vector<16x128xf32>
    %54 = tpu.matmul %53, %52, %cst_47 {dimension_numbers = #tpu.dot_dimension_numbers<[1], [0], [0], [1], [0, 0, 1, 1], [], []>} : vector<16x8xf32>, vector<8x128xf32>, vector<16x128xf32> -> vector<16x128xf32>
    %55 = math.log %54 : vector<16x128xf32>
    %c3 = arith.constant 3 : index
    %c0_48 = arith.constant 0 : index
    %c0_49 = arith.constant 0 : index
    %56 = vector.load %arg4[%c3, %c0_48, %c0_49] : memref<4x16x128xf32, #tpu.memory_space<vmem>>, vector<1x16x128xf32>
    %57 = vector.shape_cast %56 : vector<1x16x128xf32> to vector<16x128xf32>
    %58 = math.log %57 : vector<16x128xf32>
    %59 = arith.subf %55, %58 : vector<16x128xf32>
    %c0_50 = arith.constant 0 : index
    %c0_51 = arith.constant 0 : index
    %60 = vector.load %arg6[%c0_50, %c0_51] : memref<16x128xf32, #tpu.memory_space<vmem>>, vector<16x128xf32>
    %61 = arith.addf %60, %59 : vector<16x128xf32>
    %c0_52 = arith.constant 0 : index
    %c0_53 = arith.constant 0 : index
    %62 = vector.load %arg6[%c0_52, %c0_53] : memref<16x128xf32, #tpu.memory_space<vmem>>, vector<16x128xf32>
    tpu.vector_store %arg6[%c0_52, %c0_53], %61 {strides = array<i32>} : memref<16x128xf32, #tpu.memory_space<vmem>>, vector<16x128xf32>,
    %c0_54 = arith.constant 0 : index
    %c0_55 = arith.constant 0 : index
    %63 = vector.load %arg7[%c0_54, %c0_55] : memref<16x128xf32, #tpu.memory_space<vmem>>, vector<16x128xf32>
    %64 = arith.mulf %59, %59 : vector<16x128xf32>
    %65 = arith.addf %63, %64 : vector<16x128xf32>
    %c0_56 = arith.constant 0 : index
    %c0_57 = arith.constant 0 : index
    %66 = vector.load %arg7[%c0_56, %c0_57] : memref<16x128xf32, #tpu.memory_space<vmem>>, vector<16x128xf32>
    tpu.vector_store %arg7[%c0_56, %c0_57], %65 {strides = array<i32>} : memref<16x128xf32, #tpu.memory_space<vmem>>, vector<16x128xf32>,
    %c2_i32 = arith.constant 2 : i32
    %67 = arith.cmpi eq, %arg0, %c2_i32 : i32
    %68 = arith.extui %67 : i1 to i32
    %c0_i32_58 = arith.constant 0 : i32
    %69 = arith.cmpi ne, %68, %c0_i32_58 : i32
    scf.if %69 {
      %c0_59 = arith.constant 0 : index
      %c0_60 = arith.constant 0 : index
      %70 = vector.load %arg6[%c0_59, %c0_60] : memref<16x128xf32, #tpu.memory_space<vmem>>, vector<16x128xf32>
      %71 = vector.shape_cast %70 : vector<16x128xf32> to vector<1x16x128xf32>
      %cst_61 = arith.constant dense<0.000000e+00> : vector<1xf32>
      %72 = vector.multi_reduction <add>, %71, %cst_61 [1, 2] : vector<1x16x128xf32> to vector<1xf32>
      %73 = vector.shape_cast %72 : vector<1xf32> to vector<1x1x1xf32>
      %74 = vector.extract %73[0, 0, 0] : f32 from vector<1x1x1xf32>
      %c0_62 = arith.constant 0 : index
      %75 = memref.load %arg5[%c0_62] : memref<2xf32, #tpu.memory_space<smem>>
      memref.store %74, %arg5[%c0_62] : memref<2xf32, #tpu.memory_space<smem>>
      %c0_63 = arith.constant 0 : index
      %c0_64 = arith.constant 0 : index
      %76 = vector.load %arg7[%c0_63, %c0_64] : memref<16x128xf32, #tpu.memory_space<vmem>>, vector<16x128xf32>
      %77 = vector.shape_cast %76 : vector<16x128xf32> to vector<1x16x128xf32>
      %cst_65 = arith.constant dense<0.000000e+00> : vector<1xf32>
      %78 = vector.multi_reduction <add>, %77, %cst_65 [1, 2] : vector<1x16x128xf32> to vector<1xf32>
      %79 = vector.shape_cast %78 : vector<1xf32> to vector<1x1x1xf32>
      %80 = vector.extract %79[0, 0, 0] : f32 from vector<1x1x1xf32>
      %c1_66 = arith.constant 1 : index
      %81 = memref.load %arg5[%c1_66] : memref<2xf32, #tpu.memory_space<smem>>
      memref.store %80, %arg5[%c1_66] : memref<2xf32, #tpu.memory_space<smem>>
    } else {
    }
    return
  }
  func.func @transform_0(%arg0: i32) -> (i32, i32, i32) {
    %c0_i32 = arith.constant 0 : i32
    %c0_i32_0 = arith.constant 0 : i32
    %c0_i32_1 = arith.constant 0 : i32
    return %arg0, %c0_i32, %c0_i32_0 : i32, i32, i32
  }
  func.func @transform_1(%arg0: i32) -> (i32, i32) {
    %c0_i32 = arith.constant 0 : i32
    %c0_i32_0 = arith.constant 0 : i32
    %c0_i32_1 = arith.constant 0 : i32
    return %c0_i32, %c0_i32_0 : i32, i32
  }
  func.func @transform_2(%arg0: i32) -> (i32, i32) {
    %c0_i32 = arith.constant 0 : i32
    %c0_i32_0 = arith.constant 0 : i32
    %c0_i32_1 = arith.constant 0 : i32
    return %c0_i32, %c0_i32_0 : i32, i32
  }
  func.func @transform_3(%arg0: i32) -> (i32, i32, i32) {
    %c0_i32 = arith.constant 0 : i32
    %c0_i32_0 = arith.constant 0 : i32
    %c0_i32_1 = arith.constant 0 : i32
    return %arg0, %c0_i32, %c0_i32_0 : i32, i32, i32
  }
  func.func @transform_4(%arg0: i32) -> i32 {
    %c0_i32 = arith.constant 0 : i32
    %c0_i32_0 = arith.constant 0 : i32
    return %c0_i32 : i32
  }
}

</mosaic_0001>

<llo_original>
// kernel: tpu_custom_call.1
$region0: #{tpu_custom_call.1}
  #allocation0 [shape = 'u32[]', space=smem, size = 0x4, offset = 0x4, fixed_abs, tag = 'smem constant byte address 0x4 - core index']
  #allocation1 [shape = 'u32[144,128]{1,0:T(1,128)}', space=vmem, size = 0x12000, scoped, tag = 'internal scratch']
  #allocation2 [shape = 'f32[16,128]{1,0:T(8,128)}', space=vmem, size = 0x2000, scoped, tag = 'scratch operand']
  #allocation3 [shape = 'f32[16,128]{1,0:T(8,128)}', space=vmem, size = 0x2000, scoped, tag = 'scratch operand']
  %s0 = inlined_call_operand.hbm [shape: f32[12,8,64], index: 0, kind: input, shape index: {}]
  %s1 = inlined_call_operand.vmem [shape: f32[16,8], index: 1, kind: input, shape index: {}]
  %s2 = inlined_call_operand.hbm [shape: f32[64,128], index: 2, kind: input, shape index: {}]
  %s3 = inlined_call_operand.hbm [shape: f32[12,16,128], index: 3, kind: input, shape index: {}]
  %s4 = inlined_call_operand.hbm [shape: f32[2], index: 4, kind: output, shape index: {}]
  %s5 = sld [smem:[#allocation0]]
  $region69: #{tpu_custom_call.1} parent=0
    _
  %s7 = ssub.s32 1, %s5
  %s8 = scalar_select 0, %s7, %s5
  $region1: #{tpu_custom_call.1} parent=0
    #allocation4 [shape = 'u8[32768]{0}', space=vmem, size = 0x8000, scoped, tag = 'input window, operand 0']
    #allocation5 [shape = 's32[2]{0}', space=sflag, size = 0x8, scoped, tag = 'scoped memory for tpu_custom_call.1']
    #allocation6 [shape = 's32[2]{0}', space=sflag, size = 0x8, scoped, tag = 'scoped memory for tpu_custom_call.1']
    #allocation7 [shape = 'u8[32768]{0}', space=vmem, size = 0x8000, scoped, tag = 'input window, operand 2, single buffered']
    #allocation8 [shape = 's32[1]{0}', space=sflag, size = 0x4, scoped, tag = 'scoped memory for tpu_custom_call.1']
    #allocation9 [shape = 'u8[65536]{0}', space=vmem, size = 0x10000, scoped, tag = 'input window, operand 3']
    #allocation10 [shape = 'u8[512]{0}', space=smem, size = 0x200, scoped, tag = 'output window, operand 0, single buffered']
    %9 = vsyncpa [#allocation5], 0
    %s10 = scalar_lea.sflag [#allocation5], 1
    %11 = vsyncpa %s10, 0
    %12 = vsyncpa [#allocation8], 0
    %13 = vsyncpa [#allocation6], 0
    loop: start=0, step=1, limit=5
    $region2: #{tpu_custom_call.1} parent=1 // loop_pre_header
      _
    $region3: #{tpu_custom_call.1} parent=1 // loop_header
      %s15 = sphi 0, %s19
      %p16 = scmp.ge.s32.totalorder %s15, 5
      %s25 = sphi 0, %s27
      %s28 = sphi 0, %s25
      %s29 = sphi 0, %s28
      %s45 = sphi 0, %s29
      %s49 = sphi 0, %s49
      %s51 = sphi 0, %s49
      %s52 = sphi 0, %s51
      %s66 = sphi 0, %s52
      %s70 = sphi 0, %s70
      %s72 = sphi 0, %s70
      %s73 = sphi 0, %s72
      %s87 = sphi 0, %s73
      %s93 = sphi 0, %s95
      %s96 = sphi 0, %s93
      %s97 = sphi 0, %s96
      %s113 = sphi 0, %s97
      %s117 = sphi 0, %s117
      %s119 = sphi 0, %s117
      %s120 = sphi 0, %s119
      %s134 = sphi 0, %s120
    $region4: #{tpu_custom_call.1} parent=1 // loop_header_branch
      %18 = sbr.rel (%p16) target = $region8
    $region5: #{tpu_custom_call.1} parent=1 // loop_body
      %s20 = ssub.s32 %s15, 1
      %s21 = ssub.s32 %s15, 2
      %s22 = sadd.s32 %s15, 1
      %s23 = ssub.s32 %s15, %s22
      %p24 = scmp.eq.s32.totalorder %s23, 0
      %s26 = sadd.s32 %s25, 1
      %s27 = scalar_select %p24, %s25, %s26
      %p30 = pneg %p24
      %p31 = scmp.eq.s32.totalorder %s15, 2
      %p32 = por %p30, %p31
      %p33 = scmp.ne.s32.totalorder %s25, %s28
      %p34 = scmp.eq.s32.totalorder %s15, 0
      %p35 = por %p33, %p34
      %p36 = scmp.ne.s32.totalorder %s25, %s28
      %p37 = scmp.eq.s32.totalorder %s20, 2
      %p38 = por %p36, %p37
      %p39 = scmp.ne.s32.totalorder %s28, %s29
      %p40 = scmp.eq.s32.totalorder %s20, 0
      %p41 = por %p39, %p40
      %p42 = scmp.ne.s32.totalorder %s28, %s29
      %p43 = scmp.eq.s32.totalorder %s21, 2
      %p44 = por %p42, %p43
      %p46 = scmp.ne.s32.totalorder %s29, %s45
      %p47 = scmp.eq.s32.totalorder %s21, 0
      %p48 = por %p46, %p47
      %s50 = sadd.s32 %s49, 1
      %p53 = scmp.eq.s32.totalorder %s15, 2
      %p54 = scmp.ne.s32.totalorder %s49, %s51
      %p55 = scmp.eq.s32.totalorder %s15, 0
      %p56 = por %p54, %p55
      %p57 = scmp.ne.s32.totalorder %s49, %s51
      %p58 = scmp.eq.s32.totalorder %s20, 2
      %p59 = por %p57, %p58
      %p60 = scmp.ne.s32.totalorder %s51, %s52
      %p61 = scmp.eq.s32.totalorder %s20, 0
      %p62 = por %p60, %p61
      %p63 = scmp.ne.s32.totalorder %s51, %s52
      %p64 = scmp.eq.s32.totalorder %s21, 2
      %p65 = por %p63, %p64
      %p67 = scmp.ne.s32.totalorder %s52, %s66
      %p68 = scmp.eq.s32.totalorder %s21, 0
      %p69 = por %p67, %p68
      %s71 = sadd.s32 %s70, 1
      %p74 = scmp.eq.s32.totalorder %s15, 2
      %p75 = scmp.ne.s32.totalorder %s70, %s72
      %p76 = scmp.eq.s32.totalorder %s15, 0
      %p77 = por %p75, %p76
      %p78 = scmp.ne.s32.totalorder %s70, %s72
      %p79 = scmp.eq.s32.totalorder %s20, 2
      %p80 = por %p78, %p79
      %p81 = scmp.ne.s32.totalorder %s72, %s73
      %p82 = scmp.eq.s32.totalorder %s20, 0
      %p83 = por %p81, %p82
      %p84 = scmp.ne.s32.totalorder %s72, %s73
      %p85 = scmp.eq.s32.totalorder %s21, 2
      %p86 = por %p84, %p85
      %p88 = scmp.ne.s32.totalorder %s73, %s87
      %p89 = scmp.eq.s32.totalorder %s21, 0
      %p90 = por %p88, %p89
      %s91 = ssub.s32 %s15, %s22
      %p92 = scmp.eq.s32.totalorder %s91, 0
      %s94 = sadd.s32 %s93, 1
      %s95 = scalar_select %p92, %s93, %s94
      %p98 = pneg %p92
      %p99 = scmp.eq.s32.totalorder %s15, 2
      %p100 = por %p98, %p99
      %p101 = scmp.ne.s32.totalorder %s93, %s96
      %p102 = scmp.eq.s32.totalorder %s15, 0
      %p103 = por %p101, %p102
      %p104 = scmp.ne.s32.totalorder %s93, %s96
      %p105 = scmp.eq.s32.totalorder %s20, 2
      %p106 = por %p104, %p105
      %p107 = scmp.ne.s32.totalorder %s96, %s97
      %p108 = scmp.eq.s32.totalorder %s20, 0
      %p109 = por %p107, %p108
      %p110 = scmp.ne.s32.totalorder %s96, %s97
      %p111 = scmp.eq.s32.totalorder %s21, 2
      %p112 = por %p110, %p111
      %p114 = scmp.ne.s32.totalorder %s97, %s113
      %p115 = scmp.eq.s32.totalorder %s21, 0
      %p116 = por %p114, %p115
      %s118 = sadd.s32 %s117, 1
      %p121 = scmp.eq.s32.totalorder %s15, 2
      %p122 = scmp.ne.s32.totalorder %s117, %s119
      %p123 = scmp.eq.s32.totalorder %s15, 0
      %p124 = por %p122, %p123
      %p125 = scmp.ne.s32.totalorder %s117, %s119
      %p126 = scmp.eq.s32.totalorder %s20, 2
      %p127 = por %p125, %p126
      %p128 = scmp.ne.s32.totalorder %s119, %s120
      %p129 = scmp.eq.s32.totalorder %s20, 0
      %p130 = por %p128, %p129
      %p131 = scmp.ne.s32.totalorder %s119, %s120
      %p132 = scmp.eq.s32.totalorder %s21, 2
      %p133 = por %p131, %p132
      %p135 = scmp.ne.s32.totalorder %s120, %s134
      %p136 = scmp.eq.s32.totalorder %s21, 0
      %p137 = por %p135, %p136
      %p138 = scmp.le.s32.totalorder 1, %s15
      %p139 = scmp.lt.s32.totalorder %s15, 4
      %p140 = pnand %p138, %p139
      %p141 = pneg %p140
      // Predicated region
      $region9: #{tpu_custom_call.1} parent=5 // pred_check
        _
      $region10: #{tpu_custom_call.1} parent=5 // pred_check_branch
        %143 = sbr.rel (%p140) target = $region12
      $region11: #{tpu_custom_call.1} parent=5 // pred_region
        %s144 = ssub.s32 %s15, 1
        // Predicated region
        $region13: #{tpu_custom_call.1} parent=11 // pred_check
          %p145 = pneg %p62
        $region14: #{tpu_custom_call.1} parent=11 // pred_check_branch
          %147 = sbr.rel (%p145) target = $region16
        $region15: #{tpu_custom_call.1} parent=11 // pred_region
          _
        $region16: #{tpu_custom_call.1} parent=11 // pred_fallthru
          _
        // Predicated region
        $region17: #{tpu_custom_call.1} parent=11 // pred_check
          %p148 = pneg %p83
        $region18: #{tpu_custom_call.1} parent=11 // pred_check_branch
          %150 = sbr.rel (%p148) target = $region20
        $region19: #{tpu_custom_call.1} parent=11 // pred_region
          %s152 = ssub.s32 1024, 1024
          %153 = vsyncadd [#allocation8], %s152
          %s154 = sshll.u32 [#allocation7], 4
          %s155 = int_to_ptr.vmem [resolvable:$true] %s154
          %160 = dma.hbm_to_vmem [thread:$0]  %s2, 1024, %s155, [#allocation8], 128, 128, 8
        $region20: #{tpu_custom_call.1} parent=11 // pred_fallthru
          _
      $region12: #{tpu_custom_call.1} parent=5 // pred_fallthru
        _
      %p161 = scmp.lt.s32.totalorder %s15, 3
      // Predicated region
      $region21: #{tpu_custom_call.1} parent=5 // pred_check
        %p162 = pneg %p161
      $region22: #{tpu_custom_call.1} parent=5 // pred_check_branch
        %164 = sbr.rel (%p162) target = $region24
      $region23: #{tpu_custom_call.1} parent=5 // pred_region
        // Predicated region
        $region25: #{tpu_custom_call.1} parent=23 // pred_check
          %p165 = pneg %p35
        $region26: #{tpu_custom_call.1} parent=23 // pred_check_branch
          %167 = sbr.rel (%p165) target = $region28
        $region27: #{tpu_custom_call.1} parent=23 // pred_region
          %s168 = sand.u32 %s15, 1
          %s169 = scalar_lea.sflag [#allocation5], %s168
          %s170 = sand.u32 %s25, 1
          %s171 = smul.addr %s170, 32
          %s172 = scalar_lea.vmem [#allocation4], %s171
          %s173 = smul.u32 4, %s15
          %s175 = ssub.s32 512, 512
          %176 = vsyncadd %s169, %s175
          %s177 = smul.addr %s173, 128
          %s178 = scalar_lea.hbm %s0, %s177
          %s179 = sshll.u32 %s172, 4
          %s180 = int_to_ptr.vmem [resolvable:$true] %s179
          %185 = dma.hbm_to_vmem [thread:$0]  %s178, 512, %s180, %s169, 128, 128, 8
        $region28: #{tpu_custom_call.1} parent=23 // pred_fallthru
          _
        // Predicated region
        $region29: #{tpu_custom_call.1} parent=23 // pred_check
          %p186 = pneg %p103
        $region30: #{tpu_custom_call.1} parent=23 // pred_check_branch
          %188 = sbr.rel (%p186) target = $region32
        $region31: #{tpu_custom_call.1} parent=23 // pred_region
          %s189 = sand.u32 %s15, 1
          %s190 = scalar_lea.sflag [#allocation5], %s189
          %s191 = sand.u32 %s93, 1
          %s192 = smul.addr %s191, 64
          %s193 = scalar_lea.vmem [#allocation9], %s192
          %s194 = smul.u32 4, %s15
          %s196 = ssub.s32 1024, 1024
          %197 = vsyncadd %s190, %s196
          %s198 = smul.addr %s194, 2
          %s199 = smul.addr %s198, 128
          %s200 = scalar_lea.hbm %s3, %s199
          %s201 = sshll.u32 %s193, 4
          %s202 = int_to_ptr.vmem [resolvable:$true] %s201
          %207 = dma.hbm_to_vmem [thread:$0]  %s200, 1024, %s202, %s190, 128, 128, 8
        $region32: #{tpu_custom_call.1} parent=23 // pred_fallthru
          _
      $region24: #{tpu_custom_call.1} parent=5 // pred_fallthru
        _
      %p208 = scmp.le.s32.totalorder 1, %s15
      %p209 = scmp.lt.s32.totalorder %s15, 4
      %p210 = pnand %p208, %p209
      %p211 = pneg %p210
      // Predicated region
      $region33: #{tpu_custom_call.1} parent=5 // pred_check
        _
      $region34: #{tpu_custom_call.1} parent=5 // pred_check_branch
        %213 = sbr.rel (%p210) target = $region36
      $region35: #{tpu_custom_call.1} parent=5 // pred_region
        %s214 = ssub.s32 %s15, 1
        %s215 = sand.u32 %s20, 1
        %s216 = scalar_lea.sflag [#allocation5], %s215
        %s217 = sand.u32 %s28, 1
        %s218 = smul.addr %s217, 32
        %s219 = scalar_lea.vmem [#allocation4], %s218
        // Predicated region
        $region37: #{tpu_custom_call.1} parent=35 // pred_check
          %p220 = pneg %p41
        $region38: #{tpu_custom_call.1} parent=35 // pred_check_branch
          %222 = sbr.rel (%p220) target = $region40
        $region39: #{tpu_custom_call.1} parent=35 // pred_region
          %223 = dma.done %s216, 512
        $region40: #{tpu_custom_call.1} parent=35 // pred_fallthru
          _
        // Predicated region
        $region41: #{tpu_custom_call.1} parent=35 // pred_check
          %p224 = pneg %p83
        $region42: #{tpu_custom_call.1} parent=35 // pred_check_branch
          %226 = sbr.rel (%p224) target = $region44
        $region43: #{tpu_custom_call.1} parent=35 // pred_region
          %227 = dma.done [#allocation8], 1024
        $region44: #{tpu_custom_call.1} parent=35 // pred_fallthru
          _
        %s228 = sand.u32 %s20, 1
        %s229 = scalar_lea.sflag [#allocation5], %s228
        %s230 = sand.u32 %s96, 1
        %s231 = smul.addr %s230, 64
        %s232 = scalar_lea.vmem [#allocation9], %s231
        // Predicated region
        $region45: #{tpu_custom_call.1} parent=35 // pred_check
          %p233 = pneg %p109
        $region46: #{tpu_custom_call.1} parent=35 // pred_check_branch
          %235 = sbr.rel (%p233) target = $region48
        $region47: #{tpu_custom_call.1} parent=35 // pred_region
          %236 = dma.done %s229, 1024
        $region48: #{tpu_custom_call.1} parent=35 // pred_fallthru
          _
        %s237 = sand.u32 %s20, 1
        %s238 = scalar_lea.sflag [#allocation5], %s237
        %s239 = sand.u32 %s28, 1
        %s240 = smul.addr %s239, 32
        %s241 = scalar_lea.vmem [#allocation4], %s240
        %p242 = pneg %p41
        %p243 = pneg %p38
        %p244 = pneg %p62
        %p245 = pneg %p59
        %p246 = pneg %p83
        %p247 = pneg %p80
        %s248 = sand.u32 %s20, 1
        %s249 = scalar_lea.sflag [#allocation5], %s248
        %s250 = sand.u32 %s96, 1
        %s251 = smul.addr %s250, 64
        %s252 = scalar_lea.vmem [#allocation9], %s251
        %p253 = pneg %p109
        %p254 = pneg %p106
        %p255 = pneg %p130
        %p256 = pneg %p127
        %s257 = smul.u32 4, %s20
        %s258 = smul.u32 4, %s20
        %p259 = scmp.eq.s32.totalorder %s20, 0
        // Predicated region
        $region49: #{tpu_custom_call.1} parent=35 // pred_check
          %p260 = pneg %p259
        $region50: #{tpu_custom_call.1} parent=35 // pred_check_branch
          %262 = sbr.rel (%p260) target = $region52
        $region51: #{tpu_custom_call.1} parent=35 // pred_region
          %263 = vst [vmem:[#allocation2] sm:$0xff] 0.0
          %264 = vst [vmem:[#allocation2 + $0x8] sm:$0xff] 0.0
          %265 = vst [vmem:[#allocation3] sm:$0xff] 0.0
          %266 = vst [vmem:[#allocation3 + $0x8] sm:$0xff] 0.0
        $region52: #{tpu_custom_call.1} parent=35 // pred_fallthru
          _
        %v267 = vld [vmem:[%s219] sm:$0xff]
        %v268 = vld [vmem:[%s219 + $0x8] sm:$0xff]
        %v269 = vld [vmem:[%s219 + $0x10] sm:$0xff]
        %v270 = vld [vmem:[%s219 + $0x18] sm:$0xff]
        %v271 = vld [vmem:[#allocation7] sm:$0xff]
        %v272 = vld [vmem:[#allocation7 + $0x8] sm:$0xff]
        %v273 = vld [vmem:[#allocation7 + $0x10] sm:$0xff]
        %v274 = vld [vmem:[#allocation7 + $0x18] sm:$0xff]
        %v275 = vld [vmem:[#allocation7 + $0x20] sm:$0xff]
        %v276 = vld [vmem:[#allocation7 + $0x28] sm:$0xff]
        %v277 = vld [vmem:[#allocation7 + $0x30] sm:$0xff]
        %v278 = vld [vmem:[#allocation7 + $0x38] sm:$0xff]
        %vm279 = vcmask 523264
        %v281 = vsel %vm279, %v267, 0
        %v284 = vsel %vm279, %v268, 0
        %v287 = vsel %vm279, %v269, 0
        %v290 = vsel %vm279, %v270, 0
        %292 = vmatprep.subr.mxu0 0.0
        %293 = vmatpush1.msra.mxu0 0.0
        %294 = vmatprep.subr.mxu0 0.0
        %295 = vmatpush1.msra.mxu0 0.0
        %296 = vmatprep.subr.mxu0 0.0
        %297 = vmatpush1.msra.mxu0 0.0
        %298 = vmatprep.subr.mxu0 0.0
        %299 = vmatpush1.msra.mxu0 0.0
        %300 = vmatprep.subr.mxu0 0.0
        %301 = vmatpush1.msra.mxu0 0.0
        %302 = vmatprep.subr.mxu0 0.0
        %303 = vmatpush1.msra.mxu0 0.0
        %304 = vmatprep.subr.mxu0 0.0
        %305 = vmatpush1.msra.mxu0 0.0
        %306 = vmatprep.subr.mxu0 0.0
        %307 = vmatpush1.msra.mxu0 0.0
        %308 = vmatprep.subr.mxu0 0.0
        %309 = vmatpush1.msra.mxu0 %v278
        %310 = vmatprep.subr.mxu0 0.0
        %311 = vmatpush1.msra.mxu0 %v277
        %312 = vmatprep.subr.mxu0 0.0
        %313 = vmatpush1.msra.mxu0 %v276
        %314 = vmatprep.subr.mxu0 0.0
        %315 = vmatpush1.msra.mxu0 %v275
        %316 = vmatprep.subr.mxu0 0.0
        %317 = vmatpush1.msra.mxu0 %v274
        %318 = vmatprep.subr.mxu0 0.0
        %319 = vmatpush1.msra.mxu0 %v273
        %320 = vmatprep.subr.mxu0 0.0
        %321 = vmatpush1.msra.mxu0 %v272
        %322 = vmatprep.subr.mxu0 0.0
        %323 = vmatpush1.msra.mxu0 %v271
        %324 = vmatprep.subr.mxu0 0.0
        %325 = vmatpush2.msra.mxu0 0.0
        %326 = vmatprep.subr.mxu0 0.0
        %327 = vmatpush2.msra.mxu0 0.0
        %328 = vmatprep.subr.mxu0 0.0
        %329 = vmatpush2.msra.mxu0 0.0
        %330 = vmatprep.subr.mxu0 0.0
        %331 = vmatpush2.msra.mxu0 0.0
        %332 = vmatprep.subr.mxu0 0.0
        %333 = vmatpush2.msra.mxu0 0.0
        %334 = vmatprep.subr.mxu0 0.0
        %335 = vmatpush2.msra.mxu0 0.0
        %336 = vmatprep.subr.mxu0 0.0
        %337 = vmatpush2.msra.mxu0 0.0
        %338 = vmatprep.subr.mxu0 0.0
        %339 = vmatpush2.msra.mxu0 0.0
        %340 = vmatprep.subr.mxu0 0.0
        %341 = vmatpush2.msra.mxu0 0.0
        %342 = vmatprep.subr.mxu0 0.0
        %343 = vmatpush2.msra.mxu0 0.0
        %344 = vmatprep.subr.mxu0 0.0
        %345 = vmatpush2.msra.mxu0 0.0
        %346 = vmatprep.subr.mxu0 0.0
        %347 = vmatpush2.msra.mxu0 0.0
        %348 = vmatprep.subr.mxu0 0.0
        %349 = vmatpush2.msra.mxu0 0.0
        %350 = vmatprep.subr.mxu0 0.0
        %351 = vmatpush2.msra.mxu0 0.0
        %352 = vmatprep.subr.mxu0 0.0
        %353 = vmatpush2.msra.mxu0 0.0
        %354 = vmatprep.subr.mxu0 0.0
        %355 = vmatpush2.msra.mxu0 0.0
        %356 = vmatprep.mubr.f32.mxu0 0.0
        %357 = vmatmul.mubr.f32.gmra.mxu0 %v281
        %v358 = vpop.f32.mrf.mxu0
        %v359 = vadd.f32 0.0, %v358
        %v360 = vpop.f32.mrf.mxu0
        %361 = vmatprep.mubr.f32.mxu0 0.0
        %362 = vmatmul.mubr.f32.gmra.mxu0 %v284
        %v363 = vpop.f32.mrf.mxu0
        %v364 = vadd.f32 0.0, %v363
        %v365 = vpop.f32.mrf.mxu0
        %366 = vmatprep.mubr.f32.mxu0 0.0
        %367 = vmatmul.mubr.f32.gmra.mxu0 %v287
        %v368 = vpop.f32.mrf.mxu0
        %v369 = vadd.f32 0.0, %v368
        %v370 = vpop.f32.mrf.mxu0
        %371 = vmatprep.mubr.f32.mxu0 0.0
        %372 = vmatmul.mubr.f32.gmra.mxu0 %v290
        %v373 = vpop.f32.mrf.mxu0
        %v374 = vadd.f32 0.0, %v373
        %v375 = vpop.f32.mrf.mxu0
        %376 = vdwg.mxu0
        %v377 = vld [vmem:[%s1] sm:$0xff]
        %v378 = vld [vmem:[%s1 + $0x8] sm:$0xff]
        %vm379 = vcmask 64512
        %v381 = vsel %vm379, %v377, 0
        %v384 = vsel %vm379, %v378, 0
        %386 = vmatprep.subr.mxu0 0.0
        %387 = vmatpush1.msra.mxu0 0.0
        %388 = vmatprep.subr.mxu0 0.0
        %389 = vmatpush1.msra.mxu0 0.0
        %390 = vmatprep.subr.mxu0 0.0
        %391 = vmatpush1.msra.mxu0 0.0
        %392 = vmatprep.subr.mxu0 0.0
        %393 = vmatpush1.msra.mxu0 0.0
        %394 = vmatprep.subr.mxu0 0.0
        %395 = vmatpush1.msra.mxu0 0.0
        %396 = vmatprep.subr.mxu0 0.0
        %397 = vmatpush1.msra.mxu0 0.0
        %398 = vmatprep.subr.mxu0 0.0
        %399 = vmatpush1.msra.mxu0 0.0
        %400 = vmatprep.subr.mxu0 0.0
        %401 = vmatpush1.msra.mxu0 0.0
        %402 = vmatprep.subr.mxu0 0.0
        %403 = vmatpush1.msra.mxu0 0.0
        %404 = vmatprep.subr.mxu0 0.0
        %405 = vmatpush1.msra.mxu0 0.0
        %406 = vmatprep.subr.mxu0 0.0
        %407 = vmatpush1.msra.mxu0 0.0
        %408 = vmatprep.subr.mxu0 0.0
        %409 = vmatpush1.msra.mxu0 0.0
        %410 = vmatprep.subr.mxu0 0.0
        %411 = vmatpush1.msra.mxu0 0.0
        %412 = vmatprep.subr.mxu0 0.0
        %413 = vmatpush1.msra.mxu0 0.0
        %414 = vmatprep.subr.mxu0 0.0
        %415 = vmatpush1.msra.mxu0 0.0
        %416 = vmatprep.subr.mxu0 0.0
        %417 = vmatpush1.msra.mxu0 %v359
        %418 = vmatprep.subr.mxu0 0.0
        %419 = vmatpush2.msra.mxu0 0.0
        %420 = vmatprep.subr.mxu0 0.0
        %421 = vmatpush2.msra.mxu0 0.0
        %422 = vmatprep.subr.mxu0 0.0
        %423 = vmatpush2.msra.mxu0 0.0
        %424 = vmatprep.subr.mxu0 0.0
        %425 = vmatpush2.msra.mxu0 0.0
        %426 = vmatprep.subr.mxu0 0.0
        %427 = vmatpush2.msra.mxu0 0.0
        %428 = vmatprep.subr.mxu0 0.0
        %429 = vmatpush2.msra.mxu0 0.0
        %430 = vmatprep.subr.mxu0 0.0
        %431 = vmatpush2.msra.mxu0 0.0
        %432 = vmatprep.subr.mxu0 0.0
        %433 = vmatpush2.msra.mxu0 0.0
        %434 = vmatprep.subr.mxu0 0.0
        %435 = vmatpush2.msra.mxu0 0.0
        %436 = vmatprep.subr.mxu0 0.0
        %437 = vmatpush2.msra.mxu0 0.0
        %438 = vmatprep.subr.mxu0 0.0
        %439 = vmatpush2.msra.mxu0 0.0
        %440 = vmatprep.subr.mxu0 0.0
        %441 = vmatpush2.msra.mxu0 0.0
        %442 = vmatprep.subr.mxu0 0.0
        %443 = vmatpush2.msra.mxu0 0.0
        %444 = vmatprep.subr.mxu0 0.0
        %445 = vmatpush2.msra.mxu0 0.0
        %446 = vmatprep.subr.mxu0 0.0
        %447 = vmatpush2.msra.mxu0 0.0
        %448 = vmatprep.subr.mxu0 0.0
        %449 = vmatpush2.msra.mxu0 0.0
        %450 = vmatprep.mubr.f32.mxu0 0.0
        %451 = vmatmul.mubr.f32.gmra.mxu0 %v381
        %v452 = vpop.f32.mrf.mxu0
        %v453 = vadd.f32 0.0, %v452
        %v454 = vpop.f32.mrf.mxu0
        %455 = vmatprep.mubr.f32.mxu0 0.0
        %456 = vmatmul.mubr.f32.gmra.mxu0 %v384
        %v457 = vpop.f32.mrf.mxu0
        %v458 = vadd.f32 0.0, %v457
        %v459 = vpop.f32.mrf.mxu0
        %460 = vdwg.mxu0
        %v461 = vlog2.pop %v453
        %v462 = vmul.f32 %v461, 0.6931472
        %v463 = vlog2.pop %v458
        %v464 = vmul.f32 %v463, 0.6931472
        %v465 = vld [vmem:[%s232] sm:$0xff]
        %v466 = vld [vmem:[%s232 + $0x8] sm:$0xff]
        %v467 = vlog2.pop %v465
        %v468 = vmul.f32 %v467, 0.6931472
        %v469 = vlog2.pop %v466
        %v470 = vmul.f32 %v469, 0.6931472
        %v471 = vsub.f32 %v462, %v468
        %v472 = vsub.f32 %v464, %v470
        %v473 = vld [vmem:[#allocation2] sm:$0xff]
        %v474 = vld [vmem:[#allocation2 + $0x8] sm:$0xff]
        %v475 = vadd.f32 %v473, %v471
        %v476 = vadd.f32 %v474, %v472
        %477 = vst [vmem:[#allocation2] sm:$0xff] %v475
        %478 = vst [vmem:[#allocation2 + $0x8] sm:$0xff] %v476
        %v479 = vld [vmem:[#allocation3] sm:$0xff]
        %v480 = vld [vmem:[#allocation3 + $0x8] sm:$0xff]
        %v481 = vmul.f32 %v471, %v471
        %v482 = vmul.f32 %v472, %v472
        %v483 = vadd.f32 %v479, %v481
        %v484 = vadd.f32 %v480, %v482
        %485 = vst [vmem:[#allocation3] sm:$0xff] %v483
        %486 = vst [vmem:[#allocation3 + $0x8] sm:$0xff] %v484
        %v487 = vld [vmem:[%s1] sm:$0xff]
        %v488 = vld [vmem:[%s1 + $0x8] sm:$0xff]
        %v490 = vsel %vm379, %v487, 0
        %v493 = vsel %vm379, %v488, 0
        %495 = vmatprep.subr.mxu0 0.0
        %496 = vmatpush1.msra.mxu0 0.0
        %497 = vmatprep.subr.mxu0 0.0
        %498 = vmatpush1.msra.mxu0 0.0
        %499 = vmatprep.subr.mxu0 0.0
        %500 = vmatpush1.msra.mxu0 0.0
        %501 = vmatprep.subr.mxu0 0.0
        %502 = vmatpush1.msra.mxu0 0.0
        %503 = vmatprep.subr.mxu0 0.0
        %504 = vmatpush1.msra.mxu0 0.0
        %505 = vmatprep.subr.mxu0 0.0
        %506 = vmatpush1.msra.mxu0 0.0
        %507 = vmatprep.subr.mxu0 0.0
        %508 = vmatpush1.msra.mxu0 0.0
        %509 = vmatprep.subr.mxu0 0.0
        %510 = vmatpush1.msra.mxu0 0.0
        %511 = vmatprep.subr.mxu0 0.0
        %512 = vmatpush1.msra.mxu0 0.0
        %513 = vmatprep.subr.mxu0 0.0
        %514 = vmatpush1.msra.mxu0 0.0
        %515 = vmatprep.subr.mxu0 0.0
        %516 = vmatpush1.msra.mxu0 0.0
        %517 = vmatprep.subr.mxu0 0.0
        %518 = vmatpush1.msra.mxu0 0.0
        %519 = vmatprep.subr.mxu0 0.0
        %520 = vmatpush1.msra.mxu0 0.0
        %521 = vmatprep.subr.mxu0 0.0
        %522 = vmatpush1.msra.mxu0 0.0
        %523 = vmatprep.subr.mxu0 0.0
        %524 = vmatpush1.msra.mxu0 0.0
        %525 = vmatprep.subr.mxu0 0.0
        %526 = vmatpush1.msra.mxu0 %v364
        %527 = vmatprep.subr.mxu0 0.0
        %528 = vmatpush2.msra.mxu0 0.0
        %529 = vmatprep.subr.mxu0 0.0
        %530 = vmatpush2.msra.mxu0 0.0
        %531 = vmatprep.subr.mxu0 0.0
        %532 = vmatpush2.msra.mxu0 0.0
        %533 = vmatprep.subr.mxu0 0.0
        %534 = vmatpush2.msra.mxu0 0.0
        %535 = vmatprep.subr.mxu0 0.0
        %536 = vmatpush2.msra.mxu0 0.0
        %537 = vmatprep.subr.mxu0 0.0
        %538 = vmatpush2.msra.mxu0 0.0
        %539 = vmatprep.subr.mxu0 0.0
        %540 = vmatpush2.msra.mxu0 0.0
        %541 = vmatprep.subr.mxu0 0.0
        %542 = vmatpush2.msra.mxu0 0.0
        %543 = vmatprep.subr.mxu0 0.0
        %544 = vmatpush2.msra.mxu0 0.0
        %545 = vmatprep.subr.mxu0 0.0
        %546 = vmatpush2.msra.mxu0 0.0
        %547 = vmatprep.subr.mxu0 0.0
        %548 = vmatpush2.msra.mxu0 0.0
        %549 = vmatprep.subr.mxu0 0.0
        %550 = vmatpush2.msra.mxu0 0.0
        %551 = vmatprep.subr.mxu0 0.0
        %552 = vmatpush2.msra.mxu0 0.0
        %553 = vmatprep.subr.mxu0 0.0
        %554 = vmatpush2.msra.mxu0 0.0
        %555 = vmatprep.subr.mxu0 0.0
        %556 = vmatpush2.msra.mxu0 0.0
        %557 = vmatprep.subr.mxu0 0.0
        %558 = vmatpush2.msra.mxu0 0.0
        %559 = vmatprep.mubr.f32.mxu0 0.0
        %560 = vmatmul.mubr.f32.gmra.mxu0 %v490
        %v561 = vpop.f32.mrf.mxu0
        %v562 = vadd.f32 0.0, %v561
        %v563 = vpop.f32.mrf.mxu0
        %564 = vmatprep.mubr.f32.mxu0 0.0
        %565 = vmatmul.mubr.f32.gmra.mxu0 %v493
        %v566 = vpop.f32.mrf.mxu0
        %v567 = vadd.f32 0.0, %v566
        %v568 = vpop.f32.mrf.mxu0
        %569 = vdwg.mxu0
        %v570 = vlog2.pop %v562
        %v571 = vmul.f32 %v570, 0.6931472
        %v572 = vlog2.pop %v567
        %v573 = vmul.f32 %v572, 0.6931472
        %s574 = scalar_lea.vmem %s232, 16 [#allocation9]
        %v575 = vld [vmem:[%s574] sm:$0xff]
        %v576 = vld [vmem:[%s574 + $0x8] sm:$0xff]
        %v577 = vlog2.pop %v575
        %v578 = vmul.f32 %v577, 0.6931472
        %v579 = vlog2.pop %v576
        %v580 = vmul.f32 %v579, 0.6931472
        %v581 = vsub.f32 %v571, %v578
        %v582 = vsub.f32 %v573, %v580
        %v583 = vld [vmem:[#allocation2] sm:$0xff]
        %v584 = vld [vmem:[#allocation2 + $0x8] sm:$0xff]
        %v585 = vadd.f32 %v583, %v581
        %v586 = vadd.f32 %v584, %v582
        %587 = vst [vmem:[#allocation2] sm:$0xff] %v585
        %588 = vst [vmem:[#allocation2 + $0x8] sm:$0xff] %v586
        %v589 = vld [vmem:[#allocation3] sm:$0xff]
        %v590 = vld [vmem:[#allocation3 + $0x8] sm:$0xff]
        %v591 = vmul.f32 %v581, %v581
        %v592 = vmul.f32 %v582, %v582
        %v593 = vadd.f32 %v589, %v591
        %v594 = vadd.f32 %v590, %v592
        %595 = vst [vmem:[#allocation3] sm:$0xff] %v593
        %596 = vst [vmem:[#allocation3 + $0x8] sm:$0xff] %v594
        %v597 = vld [vmem:[%s1] sm:$0xff]
        %v598 = vld [vmem:[%s1 + $0x8] sm:$0xff]
        %v600 = vsel %vm379, %v597, 0
        %v603 = vsel %vm379, %v598, 0
        %605 = vmatprep.subr.mxu0 0.0
        %606 = vmatpush1.msra.mxu0 0.0
        %607 = vmatprep.subr.mxu0 0.0
        %608 = vmatpush1.msra.mxu0 0.0
        %609 = vmatprep.subr.mxu0 0.0
        %610 = vmatpush1.msra.mxu0 0.0
        %611 = vmatprep.subr.mxu0 0.0
        %612 = vmatpush1.msra.mxu0 0.0
        %613 = vmatprep.subr.mxu0 0.0
        %614 = vmatpush1.msra.mxu0 0.0
        %615 = vmatprep.subr.mxu0 0.0
        %616 = vmatpush1.msra.mxu0 0.0
        %617 = vmatprep.subr.mxu0 0.0
        %618 = vmatpush1.msra.mxu0 0.0
        %619 = vmatprep.subr.mxu0 0.0
        %620 = vmatpush1.msra.mxu0 0.0
        %621 = vmatprep.subr.mxu0 0.0
        %622 = vmatpush1.msra.mxu0 0.0
        %623 = vmatprep.subr.mxu0 0.0
        %624 = vmatpush1.msra.mxu0 0.0
        %625 = vmatprep.subr.mxu0 0.0
        %626 = vmatpush1.msra.mxu0 0.0
        %627 = vmatprep.subr.mxu0 0.0
        %628 = vmatpush1.msra.mxu0 0.0
        %629 = vmatprep.subr.mxu0 0.0
        %630 = vmatpush1.msra.mxu0 0.0
        %631 = vmatprep.subr.mxu0 0.0
        %632 = vmatpush1.msra.mxu0 0.0
        %633 = vmatprep.subr.mxu0 0.0
        %634 = vmatpush1.msra.mxu0 0.0
        %635 = vmatprep.subr.mxu0 0.0
        %636 = vmatpush1.msra.mxu0 %v369
        %637 = vmatprep.subr.mxu0 0.0
        %638 = vmatpush2.msra.mxu0 0.0
        %639 = vmatprep.subr.mxu0 0.0
        %640 = vmatpush2.msra.mxu0 0.0
        %641 = vmatprep.subr.mxu0 0.0
        %642 = vmatpush2.msra.mxu0 0.0
        %643 = vmatprep.subr.mxu0 0.0
        %644 = vmatpush2.msra.mxu0 0.0
        %645 = vmatprep.subr.mxu0 0.0
        %646 = vmatpush2.msra.mxu0 0.0
        %647 = vmatprep.subr.mxu0 0.0
        %648 = vmatpush2.msra.mxu0 0.0
        %649 = vmatprep.subr.mxu0 0.0
        %650 = vmatpush2.msra.mxu0 0.0
        %651 = vmatprep.subr.mxu0 0.0
        %652 = vmatpush2.msra.mxu0 0.0
        %653 = vmatprep.subr.mxu0 0.0
        %654 = vmatpush2.msra.mxu0 0.0
        %655 = vmatprep.subr.mxu0 0.0
        %656 = vmatpush2.msra.mxu0 0.0
        %657 = vmatprep.subr.mxu0 0.0
        %658 = vmatpush2.msra.mxu0 0.0
        %659 = vmatprep.subr.mxu0 0.0
        %660 = vmatpush2.msra.mxu0 0.0
        %661 = vmatprep.subr.mxu0 0.0
        %662 = vmatpush2.msra.mxu0 0.0
        %663 = vmatprep.subr.mxu0 0.0
        %664 = vmatpush2.msra.mxu0 0.0
        %665 = vmatprep.subr.mxu0 0.0
        %666 = vmatpush2.msra.mxu0 0.0
        %667 = vmatprep.subr.mxu0 0.0
        %668 = vmatpush2.msra.mxu0 0.0
        %669 = vmatprep.mubr.f32.mxu0 0.0
        %670 = vmatmul.mubr.f32.gmra.mxu0 %v600
        %v671 = vpop.f32.mrf.mxu0
        %v672 = vadd.f32 0.0, %v671
        %v673 = vpop.f32.mrf.mxu0
        %674 = vmatprep.mubr.f32.mxu0 0.0
        %675 = vmatmul.mubr.f32.gmra.mxu0 %v603
        %v676 = vpop.f32.mrf.mxu0
        %v677 = vadd.f32 0.0, %v676
        %v678 = vpop.f32.mrf.mxu0
        %679 = vdwg.mxu0
        %v680 = vlog2.pop %v672
        %v681 = vmul.f32 %v680, 0.6931472
        %v682 = vlog2.pop %v677
        %v683 = vmul.f32 %v682, 0.6931472
        %s684 = scalar_lea.vmem %s232, 32 [#allocation9]
        %v685 = vld [vmem:[%s684] sm:$0xff]
        %v686 = vld [vmem:[%s684 + $0x8] sm:$0xff]
        %v687 = vlog2.pop %v685
        %v688 = vmul.f32 %v687, 0.6931472
        %v689 = vlog2.pop %v686
        %v690 = vmul.f32 %v689, 0.6931472
        %v691 = vsub.f32 %v681, %v688
        %v692 = vsub.f32 %v683, %v690
        %v693 = vld [vmem:[#allocation2] sm:$0xff]
        %v694 = vld [vmem:[#allocation2 + $0x8] sm:$0xff]
        %v695 = vadd.f32 %v693, %v691
        %v696 = vadd.f32 %v694, %v692
        %697 = vst [vmem:[#allocation2] sm:$0xff] %v695
        %698 = vst [vmem:[#allocation2 + $0x8] sm:$0xff] %v696
        %v699 = vld [vmem:[#allocation3] sm:$0xff]
        %v700 = vld [vmem:[#allocation3 + $0x8] sm:$0xff]
        %v701 = vmul.f32 %v691, %v691
        %v702 = vmul.f32 %v692, %v692
        %v703 = vadd.f32 %v699, %v701
        %v704 = vadd.f32 %v700, %v702
        %705 = vst [vmem:[#allocation3] sm:$0xff] %v703
        %706 = vst [vmem:[#allocation3 + $0x8] sm:$0xff] %v704
        %v707 = vld [vmem:[%s1] sm:$0xff]
        %v708 = vld [vmem:[%s1 + $0x8] sm:$0xff]
        %v710 = vsel %vm379, %v707, 0
        %v713 = vsel %vm379, %v708, 0
        %715 = vmatprep.subr.mxu0 0.0
        %716 = vmatpush1.msra.mxu0 0.0
        %717 = vmatprep.subr.mxu0 0.0
        %718 = vmatpush1.msra.mxu0 0.0
        %719 = vmatprep.subr.mxu0 0.0
        %720 = vmatpush1.msra.mxu0 0.0
        %721 = vmatprep.subr.mxu0 0.0
        %722 = vmatpush1.msra.mxu0 0.0
        %723 = vmatprep.subr.mxu0 0.0
        %724 = vmatpush1.msra.mxu0 0.0
        %725 = vmatprep.subr.mxu0 0.0
        %726 = vmatpush1.msra.mxu0 0.0
        %727 = vmatprep.subr.mxu0 0.0
        %728 = vmatpush1.msra.mxu0 0.0
        %729 = vmatprep.subr.mxu0 0.0
        %730 = vmatpush1.msra.mxu0 0.0
        %731 = vmatprep.subr.mxu0 0.0
        %732 = vmatpush1.msra.mxu0 0.0
        %733 = vmatprep.subr.mxu0 0.0
        %734 = vmatpush1.msra.mxu0 0.0
        %735 = vmatprep.subr.mxu0 0.0
        %736 = vmatpush1.msra.mxu0 0.0
        %737 = vmatprep.subr.mxu0 0.0
        %738 = vmatpush1.msra.mxu0 0.0
        %739 = vmatprep.subr.mxu0 0.0
        %740 = vmatpush1.msra.mxu0 0.0
        %741 = vmatprep.subr.mxu0 0.0
        %742 = vmatpush1.msra.mxu0 0.0
        %743 = vmatprep.subr.mxu0 0.0
        %744 = vmatpush1.msra.mxu0 0.0
        %745 = vmatprep.subr.mxu0 0.0
        %746 = vmatpush1.msra.mxu0 %v374
        %747 = vmatprep.subr.mxu0 0.0
        %748 = vmatpush2.msra.mxu0 0.0
        %749 = vmatprep.subr.mxu0 0.0
        %750 = vmatpush2.msra.mxu0 0.0
        %751 = vmatprep.subr.mxu0 0.0
        %752 = vmatpush2.msra.mxu0 0.0
        %753 = vmatprep.subr.mxu0 0.0
        %754 = vmatpush2.msra.mxu0 0.0
        %755 = vmatprep.subr.mxu0 0.0
        %756 = vmatpush2.msra.mxu0 0.0
        %757 = vmatprep.subr.mxu0 0.0
        %758 = vmatpush2.msra.mxu0 0.0
        %759 = vmatprep.subr.mxu0 0.0
        %760 = vmatpush2.msra.mxu0 0.0
        %761 = vmatprep.subr.mxu0 0.0
        %762 = vmatpush2.msra.mxu0 0.0
        %763 = vmatprep.subr.mxu0 0.0
        %764 = vmatpush2.msra.mxu0 0.0
        %765 = vmatprep.subr.mxu0 0.0
        %766 = vmatpush2.msra.mxu0 0.0
        %767 = vmatprep.subr.mxu0 0.0
        %768 = vmatpush2.msra.mxu0 0.0
        %769 = vmatprep.subr.mxu0 0.0
        %770 = vmatpush2.msra.mxu0 0.0
        %771 = vmatprep.subr.mxu0 0.0
        %772 = vmatpush2.msra.mxu0 0.0
        %773 = vmatprep.subr.mxu0 0.0
        %774 = vmatpush2.msra.mxu0 0.0
        %775 = vmatprep.subr.mxu0 0.0
        %776 = vmatpush2.msra.mxu0 0.0
        %777 = vmatprep.subr.mxu0 0.0
        %778 = vmatpush2.msra.mxu0 0.0
        %779 = vmatprep.mubr.f32.mxu0 0.0
        %780 = vmatmul.mubr.f32.gmra.mxu0 %v710
        %v781 = vpop.f32.mrf.mxu0
        %v782 = vadd.f32 0.0, %v781
        %v783 = vpop.f32.mrf.mxu0
        %784 = vmatprep.mubr.f32.mxu0 0.0
        %785 = vmatmul.mubr.f32.gmra.mxu0 %v713
        %v786 = vpop.f32.mrf.mxu0
        %v787 = vadd.f32 0.0, %v786
        %v788 = vpop.f32.mrf.mxu0
        %789 = vdwg.mxu0
        %v790 = vlog2.pop %v782
        %v791 = vmul.f32 %v790, 0.6931472
        %v792 = vlog2.pop %v787
        %v793 = vmul.f32 %v792, 0.6931472
        %s794 = scalar_lea.vmem %s232, 48 [#allocation9]
        %v795 = vld [vmem:[%s794] sm:$0xff]
        %v796 = vld [vmem:[%s794 + $0x8] sm:$0xff]
        %v797 = vlog2.pop %v795
        %v798 = vmul.f32 %v797, 0.6931472
        %v799 = vlog2.pop %v796
        %v800 = vmul.f32 %v799, 0.6931472
        %v801 = vsub.f32 %v791, %v798
        %v802 = vsub.f32 %v793, %v800
        %v803 = vld [vmem:[#allocation2] sm:$0xff]
        %v804 = vld [vmem:[#allocation2 + $0x8] sm:$0xff]
        %v805 = vadd.f32 %v803, %v801
        %v806 = vadd.f32 %v804, %v802
        %807 = vst [vmem:[#allocation2] sm:$0xff] %v805
        %808 = vst [vmem:[#allocation2 + $0x8] sm:$0xff] %v806
        %v809 = vld [vmem:[#allocation3] sm:$0xff]
        %v810 = vld [vmem:[#allocation3 + $0x8] sm:$0xff]
        %v811 = vmul.f32 %v801, %v801
        %v812 = vmul.f32 %v802, %v802
        %v813 = vadd.f32 %v809, %v811
        %v814 = vadd.f32 %v810, %v812
        %815 = vst [vmem:[#allocation3] sm:$0xff] %v813
        %816 = vst [vmem:[#allocation3 + $0x8] sm:$0xff] %v814
        %p817 = scmp.eq.s32.totalorder %s20, 2
        // Predicated region
        $region53: #{tpu_custom_call.1} parent=35 // pred_check
          %p818 = pneg %p817
        $region54: #{tpu_custom_call.1} parent=35 // pred_check_branch
          %820 = sbr.rel (%p818) target = $region56
        $region55: #{tpu_custom_call.1} parent=35 // pred_region
          %v821 = vld [vmem:[#allocation2] sm:$0xff]
          %v822 = vld [vmem:[#allocation2 + $0x8] sm:$0xff]
          %v823 = vadd.f32 %v821, %v822
          %824 = vadd.xlane.f32.xlu0 %v823
          %v825 = vpop.xlane.xlu0 %824
          %v826 = vrot.slane %v825, 4
          %v827 = vadd.f32 %v825, %v826
          %v828 = vrot.slane %v827, 2
          %v829 = vadd.f32 %v827, %v828
          %v830 = vrot.slane %v829, 1
          %v831 = vadd.f32 %v829, %v830
          %s832 = vtos %v831
          %s833 = scalar_lea.smem [#allocation10], 0
          %834 = sst [smem:[%s833]] %s832
          %v835 = vld [vmem:[#allocation3] sm:$0xff]
          %v836 = vld [vmem:[#allocation3 + $0x8] sm:$0xff]
          %v837 = vadd.f32 %v835, %v836
          %838 = vadd.xlane.f32.xlu0 %v837
          %v839 = vpop.xlane.xlu0 %838
          %v840 = vrot.slane %v839, 4
          %v841 = vadd.f32 %v839, %v840
          %v842 = vrot.slane %v841, 2
          %v843 = vadd.f32 %v841, %v842
          %v844 = vrot.slane %v843, 1
          %v845 = vadd.f32 %v843, %v844
          %s846 = vtos %v845
          %s847 = scalar_lea.smem [#allocation10], 1
          %848 = sst [smem:[%s847]] %s846
        $region56: #{tpu_custom_call.1} parent=35 // pred_fallthru
          _
        // Predicated region
        $region57: #{tpu_custom_call.1} parent=35 // pred_check
          %p849 = pneg %p127
        $region58: #{tpu_custom_call.1} parent=35 // pred_check_branch
          %851 = sbr.rel (%p849) target = $region60
        $region59: #{tpu_custom_call.1} parent=35 // pred_region
          %s853 = ssub.s32 16, 16
          %854 = vsyncadd [#allocation6], %s853
          %857 = dma.smem_to_hbm [#allocation10], 16, %s4, [#allocation6]
        $region60: #{tpu_custom_call.1} parent=35 // pred_fallthru
          _
        // Predicated region
        $region61: #{tpu_custom_call.1} parent=35 // pred_check
          %p858 = pneg %p127
        $region62: #{tpu_custom_call.1} parent=35 // pred_check_branch
          %860 = sbr.rel (%p858) target = $region64
        $region63: #{tpu_custom_call.1} parent=35 // pred_region
          %861 = dma.done [#allocation6], 16
        $region64: #{tpu_custom_call.1} parent=35 // pred_fallthru
          _
        %862 = sfence
      $region36: #{tpu_custom_call.1} parent=5 // pred_fallthru
        _
      %p863 = scmp.le.s32.totalorder 2, %s15
      // Predicated region
      $region65: #{tpu_custom_call.1} parent=5 // pred_check
        %p864 = pneg %p863
      $region66: #{tpu_custom_call.1} parent=5 // pred_check_branch
        %866 = sbr.rel (%p864) target = $region68
      $region67: #{tpu_custom_call.1} parent=5 // pred_region
        %s867 = ssub.s32 %s15, 2
      $region68: #{tpu_custom_call.1} parent=5 // pred_fallthru
        _
    $region6: #{tpu_custom_call.1} parent=1 // loop_footer
      %s19 = sadd.s32 1, %s15
    $region7: #{tpu_custom_call.1} parent=1 // loop_footer_branch
      %14 = sbr.rel target = $region3
    $region8: #{tpu_custom_call.1} parent=1 // loop_exit
      _
    %868 = vsyncpa [#allocation5], 1
    %s869 = scalar_lea.sflag [#allocation5], 1
    %870 = vsyncpa %s869, 1
    %871 = vsyncpa [#allocation8], 1
    %872 = vsyncpa [#allocation6], 1
    %s873 = scalar_lea.sflag [#allocation6], 1
    %874 = vsyncpa %s873, 1

</llo_original>
